<compile_context>
chip_gen: v7x
topology: tpu7x:2x2x1
jax: 0.10.0
libtpu: 0.0.40
codegen_flags: <defaults>
</compile_context>

<pallas_src>
import functools
import math

import jax
import jax.numpy as jnp
from jax.experimental import pallas as pl
from jax.experimental.pallas import tpu as pltpu


def _round_up(x, m):
    return ((x + m - 1) // m) * m


def _cdiv(a, b):
    return (a + b - 1) // b


# --------------------------------------------------------------------------
# Kernel: fused residual MLP for one batch tile.
# --------------------------------------------------------------------------
def _no4_kernel(theta_ref, w_in_ref, b_in_ref, w_hid_ref, b_hid_ref,
                w_out_ref, b_out_ref, out_ref, *, n_hidden):
    x = theta_ref[...]                                   # (tb, dim), f32
    cdt = w_in_ref.dtype                                 # matmul-input dtype

    # input layer
    h = jnp.dot(x.astype(cdt), w_in_ref[...],
                preferred_element_type=jnp.float32)
    h = h + b_in_ref[...].astype(jnp.float32)            # (tb, width_p) f32
    h = jnp.tanh(h.astype(cdt))                          # tanh in compute dtype

    # hidden layers (static unroll; depth is small)
    for i in range(n_hidden):
        z = jnp.dot(h, w_hid_ref[i], preferred_element_type=jnp.float32)
        z = z + b_hid_ref[i].astype(jnp.float32)
        h = jnp.tanh(z.astype(cdt))

    # output layer + residual (kept in f32)
    v = jnp.dot(h, w_out_ref[...], preferred_element_type=jnp.float32)
    v = v + b_out_ref[...].astype(jnp.float32)           # (tb, dim) f32
    out_ref[...] = (x.astype(jnp.float32) + v).astype(out_ref.dtype)


# --------------------------------------------------------------------------
# Parameter construction / one-time preparation.
# --------------------------------------------------------------------------
def init_no4_params(key, dim, width, depth, dtype=jnp.float32):
    """Deterministic init matching nn.Linear default U(-1/sqrt(fan_in), ...)."""
    assert depth >= 3, "V assumes at least in/hidden/out layers"
    n_hidden = depth - 2

    def lin(k, fan_in, fan_out):
        k1, k2 = jax.random.split(k)
        bound = 1.0 / math.sqrt(fan_in)
        w = jax.random.uniform(k1, (fan_in, fan_out), dtype, -bound, bound)
        b = jax.random.uniform(k2, (1, fan_out), dtype, -bound, bound)
        return w, b

    keys = jax.random.split(key, n_hidden + 2)
    w_in, b_in = lin(keys[0], dim, width)
    w_hid, b_hid = [], []
    for i in range(n_hidden):
        w, b = lin(keys[1 + i], width, width)
        w_hid.append(w)
        b_hid.append(b)
    w_out, b_out = lin(keys[-1], width, dim)
    return dict(
        w_in=w_in, b_in=b_in,
        w_hid=jnp.stack(w_hid, axis=0),        # (n_hidden, width, width)
        b_hid=jnp.stack(b_hid, axis=0),        # (n_hidden, 1, width)
        w_out=w_out, b_out=b_out,
    )


def prepare_no4_params(params, weights_dtype=jnp.bfloat16):
    """One-time weight preparation (call ONCE, not per forward step):
       * zero-pad the hidden width to a multiple of 128 (inert: tanh(0)=0
         feeds zero rows/cols),
       * cast to the matmul-input dtype (bf16 by default: full-rate MXU on
         every generation, half the resident weight VMEM / HBM read).
       The param dimension `dim` is intentionally left unpadded so activations
       need no per-call padding or slicing."""
    w_in, b_in = params["w_in"], params["b_in"]
    w_hid, b_hid = params["w_hid"], params["b_hid"]
    w_out, b_out = params["w_out"], params["b_out"]

    width = w_in.shape[1]
    width_p = _round_up(width, 128)
    pw = width_p - width
    if pw:
        w_in = jnp.pad(w_in, ((0, 0), (0, pw)))
        b_in = jnp.pad(b_in, ((0, 0), (0, pw)))
        w_hid = jnp.pad(w_hid, ((0, 0), (0, pw), (0, pw)))
        b_hid = jnp.pad(b_hid, ((0, 0), (0, 0), (0, pw)))
        w_out = jnp.pad(w_out, ((0, pw), (0, 0)))
    if weights_dtype is not None:
        (w_in, b_in, w_hid, b_hid, w_out, b_out) = (
            a.astype(weights_dtype)
            for a in (w_in, b_in, w_hid, b_hid, w_out, b_out))
    return dict(w_in=w_in, b_in=b_in, w_hid=w_hid, b_hid=b_hid,
                w_out=w_out, b_out=b_out)


# --------------------------------------------------------------------------
# Forward pass.
# --------------------------------------------------------------------------
def no4_forward(theta, t, prepared, *, block_b=512):
    """theta: (*bs, dim) -> theta + V(theta), same shape.  t is ignored.
       `prepared` must come from prepare_no4_params()."""
    del t  # dummy input, unused (matches the PyTorch module)

    input_shape = theta.shape
    dim = input_shape[-1]
    theta2d = theta.reshape(-1, dim)
    B = theta2d.shape[0]

    w_in, b_in = prepared["w_in"], prepared["b_in"]
    w_hid, b_hid = prepared["w_hid"], prepared["b_hid"]
    w_out, b_out = prepared["w_out"], prepared["b_out"]
    assert w_in.shape[0] == dim and w_out.shape[1] == dim, "param/theta dim mismatch"
    width_p = w_in.shape[1]
    n_hidden = w_hid.shape[0]

    # Batch tiling: large tiles amortize per-grid-step overhead, but keep
    # >=2 grid steps for moderate batches so v7x's 2 TensorCores both work.
    bb = block_b
    if B >= 16:
        bb = min(bb, _round_up(_cdiv(B, 2), 8))
    bb = max(8, min(bb, _round_up(B, 8)))
    grid = (_cdiv(B, bb),)                   # ragged last tile handled by Pallas

    # Explicit VMEM budget: weights (double-buffered allocation, though the
    # constant index map elides the re-DMA) + activation tiles + headroom.
    # Capped at 56 MiB so it fits v7x's 64 MiB physical VMEM per TensorCore.
    w_itemsize = jnp.dtype(w_in.dtype).itemsize
    weight_bytes = (w_in.size + b_in.size + w_hid.size + b_hid.size
                    + w_out.size + b_out.size) * w_itemsize
    act_tile_bytes = 4 * bb * (dim + width_p)
    vmem_limit = int(min(max(2 * weight_bytes + 8 * act_tile_bytes + (8 << 20),
                             32 << 20), 56 << 20))

    flops = 2 * B * (dim * width_p + n_hidden * width_p * width_p + width_p * dim)
    transcendentals = B * width_p * (n_hidden + 1)
    bytes_accessed = int(2 * B * dim * jnp.dtype(theta.dtype).itemsize
                         + weight_bytes)

    kernel = functools.partial(_no4_kernel, n_hidden=n_hidden)
    out = pl.pallas_call(
        kernel,
        out_shape=jax.ShapeDtypeStruct((B, dim), theta.dtype),
        grid_spec=pltpu.PrefetchScalarGridSpec(
            num_scalar_prefetch=0,
            grid=grid,
            in_specs=[
                pl.BlockSpec((bb, dim), lambda i: (i, 0)),                  # theta
                pl.BlockSpec((dim, width_p), lambda i: (0, 0)),             # w_in
                pl.BlockSpec((1, width_p), lambda i: (0, 0)),               # b_in
                pl.BlockSpec((n_hidden, width_p, width_p),
                             lambda i: (0, 0, 0)),                          # w_hid
                pl.BlockSpec((n_hidden, 1, width_p), lambda i: (0, 0, 0)),  # b_hid
                pl.BlockSpec((width_p, dim), lambda i: (0, 0)),             # w_out
                pl.BlockSpec((1, dim), lambda i: (0, 0)),                   # b_out
            ],
            out_specs=pl.BlockSpec((bb, dim), lambda i: (i, 0)),
        ),
        compiler_params=pltpu.CompilerParams(
            dimension_semantics=("parallel",),
            vmem_limit_bytes=vmem_limit),
        cost_estimate=pl.CostEstimate(flops=flops,
                                      transcendentals=transcendentals,
                                      bytes_accessed=bytes_accessed),
    )(theta2d, w_in, b_in, w_hid, b_hid, w_out, b_out)

    return out.reshape(input_shape)


# --------------------------------------------------------------------------
# Plain-JAX reference (f32) of NO4.forward for correctness checking.
# --------------------------------------------------------------------------
def _reference_forward(theta, params):
    shape = theta.shape
    x = theta.reshape(-1, shape[-1])
    h = jnp.tanh(x @ params["w_in"] + params["b_in"])
    for i in range(params["w_hid"].shape[0]):
        h = jnp.tanh(h @ params["w_hid"][i] + params["b_hid"][i])
    v = h @ params["w_out"] + params["b_out"]
    return (x + v).reshape(shape)


if __name__ == "__main__":
    # Small stand-ins for (dim=970, width=1000, depth=5); dim/width chosen NOT
    # to be 128-multiples so the padding / unpadded-dim paths are exercised.
    dim, width, depth = 120, 200, 5
    bs = (2, 8)  # leading batch dims -> exercises the reshape(-1, dim) path

    key = jax.random.PRNGKey(0)
    k_theta, k_params = jax.random.split(key)
    theta = jax.random.normal(k_theta, (*bs, dim), dtype=jnp.float32)
    t = jnp.zeros((), jnp.float32)  # dummy input, unused
    params = init_no4_params(k_params, dim, width, depth)

    ref = _reference_forward(theta, params)

    # f32 weight path: tight tolerance against the f32 reference.
    prep_f32 = prepare_no4_params(params, weights_dtype=jnp.float32)
    fwd = jax.jit(no4_forward)
    out_f32 = jax.block_until_ready(fwd(theta, t, prep_f32))
    assert out_f32.shape == theta.shape
    assert jnp.allclose(out_f32, ref, atol=1e-3, rtol=1e-3), "f32 path mismatch"

    # Default bf16 matmul-input path: loosened tolerance (bf16 MXU inputs,
    # f32 accumulation).
    prep_bf16 = prepare_no4_params(params)           # weights_dtype=bf16 default
    out_bf16 = jax.block_until_ready(fwd(theta, t, prep_bf16))
    assert out_bf16.shape == theta.shape
    assert jnp.allclose(out_bf16, ref, atol=1e-1, rtol=1e-1), "bf16 path mismatch"

    print("KERNEL_OK")
</pallas_src>

<mosaic_0001>
module attributes {stable_mosaic.version = 11 : i64} {
  func.func @_no4_kernel(%arg0: i32, %arg1: memref<8x120xf32, #tpu.memory_space<vmem>>, %arg2: memref<120x256xf32, #tpu.memory_space<vmem>>, %arg3: memref<1x256xf32, #tpu.memory_space<vmem>>, %arg4: memref<3x256x256xf32, #tpu.memory_space<vmem>>, %arg5: memref<3x1x256xf32, #tpu.memory_space<vmem>>, %arg6: memref<256x120xf32, #tpu.memory_space<vmem>>, %arg7: memref<1x120xf32, #tpu.memory_space<vmem>>, %arg8: memref<8x120xf32, #tpu.memory_space<vmem>>) attributes {dimension_semantics = [#tpu.dimension_semantics<parallel>], iteration_bounds = array<i64: 2>, scalar_prefetch = 0 : i64, scratch_operands = 0 : i64, tpu.core_type = #tpu.core_type<tc>, window_params = [{transform_indices = @transform_0, window_bounds = array<i64: 8, 120>}, {pipeline_mode = #tpu.pipeline_mode<synchronous>, transform_indices = @transform_1, window_bounds = array<i64: 120, 256>}, {pipeline_mode = #tpu.pipeline_mode<synchronous>, transform_indices = @transform_2, window_bounds = array<i64: 1, 256>}, {pipeline_mode = #tpu.pipeline_mode<synchronous>, transform_indices = @transform_3, window_bounds = array<i64: 3, 256, 256>}, {pipeline_mode = #tpu.pipeline_mode<synchronous>, transform_indices = @transform_4, window_bounds = array<i64: 3, 1, 256>}, {pipeline_mode = #tpu.pipeline_mode<synchronous>, transform_indices = @transform_5, window_bounds = array<i64: 256, 120>}, {pipeline_mode = #tpu.pipeline_mode<synchronous>, transform_indices = @transform_6, window_bounds = array<i64: 1, 120>}, {transform_indices = @transform_7, window_bounds = array<i64: 8, 120>}]} {
    %c0 = arith.constant 0 : index
    %c0_0 = arith.constant 0 : index
    %0 = vector.load %arg1[%c0, %c0_0] : memref<8x120xf32, #tpu.memory_space<vmem>>, vector<8x120xf32>
    %c0_1 = arith.constant 0 : index
    %c0_2 = arith.constant 0 : index
    %1 = vector.load %arg2[%c0_1, %c0_2] : memref<120x256xf32, #tpu.memory_space<vmem>>, vector<120x256xf32>
    %cst = arith.constant dense<0.000000e+00> : vector<8x256xf32>
    %2 = tpu.matmul %0, %1, %cst {dimension_numbers = #tpu.dot_dimension_numbers<[1], [0], [0], [1], [0, 0, 1, 1], [], []>} : vector<8x120xf32>, vector<120x256xf32>, vector<8x256xf32> -> vector<8x256xf32>
    %c0_3 = arith.constant 0 : index
    %c0_4 = arith.constant 0 : index
    %3 = vector.load %arg3[%c0_3, %c0_4] : memref<1x256xf32, #tpu.memory_space<vmem>>, vector<1x256xf32>
    %4 = vector.broadcast %3 : vector<1x256xf32> to vector<8x256xf32>
    %5 = arith.addf %2, %4 : vector<8x256xf32>
    %6 = math.tanh %5 : vector<8x256xf32>
    %c0_5 = arith.constant 0 : index
    %c0_6 = arith.constant 0 : index
    %c0_7 = arith.constant 0 : index
    %7 = vector.load %arg4[%c0_5, %c0_6, %c0_7] : memref<3x256x256xf32, #tpu.memory_space<vmem>>, vector<1x256x256xf32>
    %8 = vector.shape_cast %7 : vector<1x256x256xf32> to vector<256x256xf32>
    %cst_8 = arith.constant dense<0.000000e+00> : vector<8x256xf32>
    %9 = tpu.matmul %6, %8, %cst_8 {dimension_numbers = #tpu.dot_dimension_numbers<[1], [0], [0], [1], [0, 0, 1, 1], [], []>} : vector<8x256xf32>, vector<256x256xf32>, vector<8x256xf32> -> vector<8x256xf32>
    %c0_9 = arith.constant 0 : index
    %c0_10 = arith.constant 0 : index
    %c0_11 = arith.constant 0 : index
    %10 = vector.load %arg5[%c0_9, %c0_10, %c0_11] : memref<3x1x256xf32, #tpu.memory_space<vmem>>, vector<1x1x256xf32>
    %11 = vector.shape_cast %10 : vector<1x1x256xf32> to vector<1x256xf32>
    %12 = vector.broadcast %11 : vector<1x256xf32> to vector<8x256xf32>
    %13 = arith.addf %9, %12 : vector<8x256xf32>
    %14 = math.tanh %13 : vector<8x256xf32>
    %c1 = arith.constant 1 : index
    %c0_12 = arith.constant 0 : index
    %c0_13 = arith.constant 0 : index
    %15 = vector.load %arg4[%c1, %c0_12, %c0_13] : memref<3x256x256xf32, #tpu.memory_space<vmem>>, vector<1x256x256xf32>
    %16 = vector.shape_cast %15 : vector<1x256x256xf32> to vector<256x256xf32>
    %cst_14 = arith.constant dense<0.000000e+00> : vector<8x256xf32>
    %17 = tpu.matmul %14, %16, %cst_14 {dimension_numbers = #tpu.dot_dimension_numbers<[1], [0], [0], [1], [0, 0, 1, 1], [], []>} : vector<8x256xf32>, vector<256x256xf32>, vector<8x256xf32> -> vector<8x256xf32>
    %c1_15 = arith.constant 1 : index
    %c0_16 = arith.constant 0 : index
    %c0_17 = arith.constant 0 : index
    %18 = vector.load %arg5[%c1_15, %c0_16, %c0_17] : memref<3x1x256xf32, #tpu.memory_space<vmem>>, vector<1x1x256xf32>
    %19 = vector.shape_cast %18 : vector<1x1x256xf32> to vector<1x256xf32>
    %20 = vector.broadcast %19 : vector<1x256xf32> to vector<8x256xf32>
    %21 = arith.addf %17, %20 : vector<8x256xf32>
    %22 = math.tanh %21 : vector<8x256xf32>
    %c2 = arith.constant 2 : index
    %c0_18 = arith.constant 0 : index
    %c0_19 = arith.constant 0 : index
    %23 = vector.load %arg4[%c2, %c0_18, %c0_19] : memref<3x256x256xf32, #tpu.memory_space<vmem>>, vector<1x256x256xf32>
    %24 = vector.shape_cast %23 : vector<1x256x256xf32> to vector<256x256xf32>
    %cst_20 = arith.constant dense<0.000000e+00> : vector<8x256xf32>
    %25 = tpu.matmul %22, %24, %cst_20 {dimension_numbers = #tpu.dot_dimension_numbers<[1], [0], [0], [1], [0, 0, 1, 1], [], []>} : vector<8x256xf32>, vector<256x256xf32>, vector<8x256xf32> -> vector<8x256xf32>
    %c2_21 = arith.constant 2 : index
    %c0_22 = arith.constant 0 : index
    %c0_23 = arith.constant 0 : index
    %26 = vector.load %arg5[%c2_21, %c0_22, %c0_23] : memref<3x1x256xf32, #tpu.memory_space<vmem>>, vector<1x1x256xf32>
    %27 = vector.shape_cast %26 : vector<1x1x256xf32> to vector<1x256xf32>
    %28 = vector.broadcast %27 : vector<1x256xf32> to vector<8x256xf32>
    %29 = arith.addf %25, %28 : vector<8x256xf32>
    %30 = math.tanh %29 : vector<8x256xf32>
    %c0_24 = arith.constant 0 : index
    %c0_25 = arith.constant 0 : index
    %31 = vector.load %arg6[%c0_24, %c0_25] : memref<256x120xf32, #tpu.memory_space<vmem>>, vector<256x120xf32>
    %cst_26 = arith.constant dense<0.000000e+00> : vector<8x120xf32>
    %32 = tpu.matmul %30, %31, %cst_26 {dimension_numbers = #tpu.dot_dimension_numbers<[1], [0], [0], [1], [0, 0, 1, 1], [], []>} : vector<8x256xf32>, vector<256x120xf32>, vector<8x120xf32> -> vector<8x120xf32>
    %c0_27 = arith.constant 0 : index
    %c0_28 = arith.constant 0 : index
    %33 = vector.load %arg7[%c0_27, %c0_28] : memref<1x120xf32, #tpu.memory_space<vmem>>, vector<1x120xf32>
    %34 = vector.broadcast %33 : vector<1x120xf32> to vector<8x120xf32>
    %35 = arith.addf %32, %34 : vector<8x120xf32>
    %36 = arith.addf %0, %35 : vector<8x120xf32>
    %c0_29 = arith.constant 0 : index
    %c0_30 = arith.constant 0 : index
    %37 = vector.load %arg8[%c0_29, %c0_30] : memref<8x120xf32, #tpu.memory_space<vmem>>, vector<8x120xf32>
    tpu.vector_store %arg8[%c0_29, %c0_30], %36 {strides = array<i32>} : memref<8x120xf32, #tpu.memory_space<vmem>>, vector<8x120xf32>,
    return
  }
  func.func @transform_0(%arg0: i32) -> (i32, i32) {
    %c0_i32 = arith.constant 0 : i32
    %c0_i32_0 = arith.constant 0 : i32
    return %arg0, %c0_i32 : i32, i32
  }
  func.func @transform_1(%arg0: i32) -> (i32, i32) {
    %c0_i32 = arith.constant 0 : i32
    %c0_i32_0 = arith.constant 0 : i32
    %c0_i32_1 = arith.constant 0 : i32
    return %c0_i32, %c0_i32_0 : i32, i32
  }
  func.func @transform_2(%arg0: i32) -> (i32, i32) {
    %c0_i32 = arith.constant 0 : i32
    %c0_i32_0 = arith.constant 0 : i32
    %c0_i32_1 = arith.constant 0 : i32
    return %c0_i32, %c0_i32_0 : i32, i32
  }
  func.func @transform_3(%arg0: i32) -> (i32, i32, i32) {
    %c0_i32 = arith.constant 0 : i32
    %c0_i32_0 = arith.constant 0 : i32
    %c0_i32_1 = arith.constant 0 : i32
    %c0_i32_2 = arith.constant 0 : i32
    return %c0_i32, %c0_i32_0, %c0_i32_1 : i32, i32, i32
  }
  func.func @transform_4(%arg0: i32) -> (i32, i32, i32) {
    %c0_i32 = arith.constant 0 : i32
    %c0_i32_0 = arith.constant 0 : i32
    %c0_i32_1 = arith.constant 0 : i32
    %c0_i32_2 = arith.constant 0 : i32
    return %c0_i32, %c0_i32_0, %c0_i32_1 : i32, i32, i32
  }
  func.func @transform_5(%arg0: i32) -> (i32, i32) {
    %c0_i32 = arith.constant 0 : i32
    %c0_i32_0 = arith.constant 0 : i32
    %c0_i32_1 = arith.constant 0 : i32
    return %c0_i32, %c0_i32_0 : i32, i32
  }
  func.func @transform_6(%arg0: i32) -> (i32, i32) {
    %c0_i32 = arith.constant 0 : i32
    %c0_i32_0 = arith.constant 0 : i32
    %c0_i32_1 = arith.constant 0 : i32
    return %c0_i32, %c0_i32_0 : i32, i32
  }
  func.func @transform_7(%arg0: i32) -> (i32, i32) {
    %c0_i32 = arith.constant 0 : i32
    %c0_i32_0 = arith.constant 0 : i32
    return %arg0, %c0_i32 : i32, i32
  }
}

</mosaic_0001>

<llo_original>
// kernel: no4_forward.1
$region0: #{no4_forward.1}
  #allocation0 [shape = 'u32[]', space=smem, size = 0x4, offset = 0x4, fixed_abs, tag = 'smem constant byte address 0x4 - core index']
  #allocation1 [shape = 'u32[144,128]{1,0:T(1,128)}', space=vmem, size = 0x12000, scoped, tag = 'internal scratch']
  %s0 = inlined_call_operand.vmem [shape: f32[16,120], index: 0, kind: input, shape index: {}]
  %s1 = inlined_call_operand.vmem [shape: f32[120,256], index: 1, kind: input, shape index: {}]
  %s2 = inlined_call_operand.vmem [shape: f32[1,256], index: 2, kind: input, shape index: {}]
  %s3 = inlined_call_operand.hbm [shape: f32[3,256,256], index: 3, kind: input, shape index: {}]
  %s4 = inlined_call_operand.vmem [shape: f32[3,1,256], index: 4, kind: input, shape index: {}]
  %s5 = inlined_call_operand.vmem [shape: f32[256,120], index: 5, kind: input, shape index: {}]
  %s6 = inlined_call_operand.vmem [shape: f32[1,120], index: 6, kind: input, shape index: {}]
  %s7 = inlined_call_operand.hbm [shape: f32[16,120], index: 7, kind: output, shape index: {}]
  %s8 = sld [smem:[#allocation0]]
  $region65: #{no4_forward.1} parent=0
    _
  %s10 = ssub.s32 1, %s8
  %s11 = scalar_select 0, %s10, %s8
  $region1: #{no4_forward.1} parent=0
    #allocation2 [shape = 'u8[786432]{0}', space=vmem, size = 0xc0000, scoped, tag = 'input window, operand 3, single buffered']
    #allocation3 [shape = 's32[2]{0}', space=sflag, size = 0x8, scoped, tag = 'scoped memory for no4_forward.1']
    #allocation4 [shape = 's32[2]{0}', space=sflag, size = 0x8, scoped, tag = 'scoped memory for no4_forward.1']
    #allocation5 [shape = 'u8[8192]{0}', space=vmem, size = 0x2000, scoped, tag = 'output window, operand 0']
    %12 = vsyncpa [#allocation3], 0
    %13 = vsyncpa [#allocation4], 0
    %s14 = scalar_lea.sflag [#allocation4], 1
    %15 = vsyncpa %s14, 0
    loop: start=0, step=1, limit=4
    $region2: #{no4_forward.1} parent=1 // loop_pre_header
      _
    $region3: #{no4_forward.1} parent=1 // loop_header
      %s17 = sphi 0, %s21
      %p18 = scmp.ge.s32.totalorder %s17, 4
      %s27 = sphi 0, %s29
      %s30 = sphi 0, %s27
      %s31 = sphi 0, %s30
      %s47 = sphi 0, %s31
      %s51 = sphi 0, %s51
      %s53 = sphi 0, %s51
      %s54 = sphi 0, %s53
      %s68 = sphi 0, %s54
      %s72 = sphi 0, %s72
      %s74 = sphi 0, %s72
      %s75 = sphi 0, %s74
      %s89 = sphi 0, %s75
      %s93 = sphi 0, %s93
      %s95 = sphi 0, %s93
      %s96 = sphi 0, %s95
      %s110 = sphi 0, %s96
      %s114 = sphi 0, %s114
      %s116 = sphi 0, %s114
      %s117 = sphi 0, %s116
      %s131 = sphi 0, %s117
      %s135 = sphi 0, %s135
      %s137 = sphi 0, %s135
      %s138 = sphi 0, %s137
      %s152 = sphi 0, %s138
      %s156 = sphi 0, %s156
      %s158 = sphi 0, %s156
      %s159 = sphi 0, %s158
      %s173 = sphi 0, %s159
      %s179 = sphi 0, %s181
      %s182 = sphi 0, %s179
      %s183 = sphi 0, %s182
      %s199 = sphi 0, %s183
    $region4: #{no4_forward.1} parent=1 // loop_header_branch
      %20 = sbr.rel (%p18) target = $region8
    $region5: #{no4_forward.1} parent=1 // loop_body
      %s22 = ssub.s32 %s17, 1
      %s23 = ssub.s32 %s17, 2
      %s24 = sadd.s32 %s17, 1
      %s25 = ssub.s32 %s17, %s24
      %p26 = scmp.eq.s32.totalorder %s25, 0
      %s28 = sadd.s32 %s27, 1
      %s29 = scalar_select %p26, %s27, %s28
      %p32 = pneg %p26
      %p33 = scmp.eq.s32.totalorder %s17, 1
      %p34 = por %p32, %p33
      %p35 = scmp.ne.s32.totalorder %s27, %s30
      %p36 = scmp.eq.s32.totalorder %s17, 0
      %p37 = por %p35, %p36
      %p38 = scmp.ne.s32.totalorder %s27, %s30
      %p39 = scmp.eq.s32.totalorder %s22, 1
      %p40 = por %p38, %p39
      %p41 = scmp.ne.s32.totalorder %s30, %s31
      %p42 = scmp.eq.s32.totalorder %s22, 0
      %p43 = por %p41, %p42
      %p44 = scmp.ne.s32.totalorder %s30, %s31
      %p45 = scmp.eq.s32.totalorder %s23, 1
      %p46 = por %p44, %p45
      %p48 = scmp.ne.s32.totalorder %s31, %s47
      %p49 = scmp.eq.s32.totalorder %s23, 0
      %p50 = por %p48, %p49
      %s52 = sadd.s32 %s51, 1
      %p55 = scmp.eq.s32.totalorder %s17, 1
      %p56 = scmp.ne.s32.totalorder %s51, %s53
      %p57 = scmp.eq.s32.totalorder %s17, 0
      %p58 = por %p56, %p57
      %p59 = scmp.ne.s32.totalorder %s51, %s53
      %p60 = scmp.eq.s32.totalorder %s22, 1
      %p61 = por %p59, %p60
      %p62 = scmp.ne.s32.totalorder %s53, %s54
      %p63 = scmp.eq.s32.totalorder %s22, 0
      %p64 = por %p62, %p63
      %p65 = scmp.ne.s32.totalorder %s53, %s54
      %p66 = scmp.eq.s32.totalorder %s23, 1
      %p67 = por %p65, %p66
      %p69 = scmp.ne.s32.totalorder %s54, %s68
      %p70 = scmp.eq.s32.totalorder %s23, 0
      %p71 = por %p69, %p70
      %s73 = sadd.s32 %s72, 1
      %p76 = scmp.eq.s32.totalorder %s17, 1
      %p77 = scmp.ne.s32.totalorder %s72, %s74
      %p78 = scmp.eq.s32.totalorder %s17, 0
      %p79 = por %p77, %p78
      %p80 = scmp.ne.s32.totalorder %s72, %s74
      %p81 = scmp.eq.s32.totalorder %s22, 1
      %p82 = por %p80, %p81
      %p83 = scmp.ne.s32.totalorder %s74, %s75
      %p84 = scmp.eq.s32.totalorder %s22, 0
      %p85 = por %p83, %p84
      %p86 = scmp.ne.s32.totalorder %s74, %s75
      %p87 = scmp.eq.s32.totalorder %s23, 1
      %p88 = por %p86, %p87
      %p90 = scmp.ne.s32.totalorder %s75, %s89
      %p91 = scmp.eq.s32.totalorder %s23, 0
      %p92 = por %p90, %p91
      %s94 = sadd.s32 %s93, 1
      %p97 = scmp.eq.s32.totalorder %s17, 1
      %p98 = scmp.ne.s32.totalorder %s93, %s95
      %p99 = scmp.eq.s32.totalorder %s17, 0
      %p100 = por %p98, %p99
      %p101 = scmp.ne.s32.totalorder %s93, %s95
      %p102 = scmp.eq.s32.totalorder %s22, 1
      %p103 = por %p101, %p102
      %p104 = scmp.ne.s32.totalorder %s95, %s96
      %p105 = scmp.eq.s32.totalorder %s22, 0
      %p106 = por %p104, %p105
      %p107 = scmp.ne.s32.totalorder %s95, %s96
      %p108 = scmp.eq.s32.totalorder %s23, 1
      %p109 = por %p107, %p108
      %p111 = scmp.ne.s32.totalorder %s96, %s110
      %p112 = scmp.eq.s32.totalorder %s23, 0
      %p113 = por %p111, %p112
      %s115 = sadd.s32 %s114, 1
      %p118 = scmp.eq.s32.totalorder %s17, 1
      %p119 = scmp.ne.s32.totalorder %s114, %s116
      %p120 = scmp.eq.s32.totalorder %s17, 0
      %p121 = por %p119, %p120
      %p122 = scmp.ne.s32.totalorder %s114, %s116
      %p123 = scmp.eq.s32.totalorder %s22, 1
      %p124 = por %p122, %p123
      %p125 = scmp.ne.s32.totalorder %s116, %s117
      %p126 = scmp.eq.s32.totalorder %s22, 0
      %p127 = por %p125, %p126
      %p128 = scmp.ne.s32.totalorder %s116, %s117
      %p129 = scmp.eq.s32.totalorder %s23, 1
      %p130 = por %p128, %p129
      %p132 = scmp.ne.s32.totalorder %s117, %s131
      %p133 = scmp.eq.s32.totalorder %s23, 0
      %p134 = por %p132, %p133
      %s136 = sadd.s32 %s135, 1
      %p139 = scmp.eq.s32.totalorder %s17, 1
      %p140 = scmp.ne.s32.totalorder %s135, %s137
      %p141 = scmp.eq.s32.totalorder %s17, 0
      %p142 = por %p140, %p141
      %p143 = scmp.ne.s32.totalorder %s135, %s137
      %p144 = scmp.eq.s32.totalorder %s22, 1
      %p145 = por %p143, %p144
      %p146 = scmp.ne.s32.totalorder %s137, %s138
      %p147 = scmp.eq.s32.totalorder %s22, 0
      %p148 = por %p146, %p147
      %p149 = scmp.ne.s32.totalorder %s137, %s138
      %p150 = scmp.eq.s32.totalorder %s23, 1
      %p151 = por %p149, %p150
      %p153 = scmp.ne.s32.totalorder %s138, %s152
      %p154 = scmp.eq.s32.totalorder %s23, 0
      %p155 = por %p153, %p154
      %s157 = sadd.s32 %s156, 1
      %p160 = scmp.eq.s32.totalorder %s17, 1
      %p161 = scmp.ne.s32.totalorder %s156, %s158
      %p162 = scmp.eq.s32.totalorder %s17, 0
      %p163 = por %p161, %p162
      %p164 = scmp.ne.s32.totalorder %s156, %s158
      %p165 = scmp.eq.s32.totalorder %s22, 1
      %p166 = por %p164, %p165
      %p167 = scmp.ne.s32.totalorder %s158, %s159
      %p168 = scmp.eq.s32.totalorder %s22, 0
      %p169 = por %p167, %p168
      %p170 = scmp.ne.s32.totalorder %s158, %s159
      %p171 = scmp.eq.s32.totalorder %s23, 1
      %p172 = por %p170, %p171
      %p174 = scmp.ne.s32.totalorder %s159, %s173
      %p175 = scmp.eq.s32.totalorder %s23, 0
      %p176 = por %p174, %p175
      %s177 = ssub.s32 %s17, %s24
      %p178 = scmp.eq.s32.totalorder %s177, 0
      %s180 = sadd.s32 %s179, 1
      %s181 = scalar_select %p178, %s179, %s180
      %p184 = pneg %p178
      %p185 = scmp.eq.s32.totalorder %s17, 1
      %p186 = por %p184, %p185
      %p187 = scmp.ne.s32.totalorder %s179, %s182
      %p188 = scmp.eq.s32.totalorder %s17, 0
      %p189 = por %p187, %p188
      %p190 = scmp.ne.s32.totalorder %s179, %s182
      %p191 = scmp.eq.s32.totalorder %s22, 1
      %p192 = por %p190, %p191
      %p193 = scmp.ne.s32.totalorder %s182, %s183
      %p194 = scmp.eq.s32.totalorder %s22, 0
      %p195 = por %p193, %p194
      %p196 = scmp.ne.s32.totalorder %s182, %s183
      %p197 = scmp.eq.s32.totalorder %s23, 1
      %p198 = por %p196, %p197
      %p200 = scmp.ne.s32.totalorder %s183, %s199
      %p201 = scmp.eq.s32.totalorder %s23, 0
      %p202 = por %p200, %p201
      %p203 = scmp.le.s32.totalorder 1, %s17
      %p204 = scmp.lt.s32.totalorder %s17, 3
      %p205 = pnand %p203, %p204
      %p206 = pneg %p205
      // Predicated region
      $region9: #{no4_forward.1} parent=5 // pred_check
        _
      $region10: #{no4_forward.1} parent=5 // pred_check_branch
        %208 = sbr.rel (%p205) target = $region12
      $region11: #{no4_forward.1} parent=5 // pred_region
        %s209 = ssub.s32 %s17, 1
        // Predicated region
        $region13: #{no4_forward.1} parent=11 // pred_check
          %p210 = pneg %p64
        $region14: #{no4_forward.1} parent=11 // pred_check_branch
          %212 = sbr.rel (%p210) target = $region16
        $region15: #{no4_forward.1} parent=11 // pred_region
          _
        $region16: #{no4_forward.1} parent=11 // pred_fallthru
          _
        // Predicated region
        $region17: #{no4_forward.1} parent=11 // pred_check
          %p213 = pneg %p85
        $region18: #{no4_forward.1} parent=11 // pred_check_branch
          %215 = sbr.rel (%p213) target = $region20
        $region19: #{no4_forward.1} parent=11 // pred_region
          _
        $region20: #{no4_forward.1} parent=11 // pred_fallthru
          _
        // Predicated region
        $region21: #{no4_forward.1} parent=11 // pred_check
          %p216 = pneg %p106
        $region22: #{no4_forward.1} parent=11 // pred_check_branch
          %218 = sbr.rel (%p216) target = $region24
        $region23: #{no4_forward.1} parent=11 // pred_region
          %s220 = ssub.s32 24576, 24576
          %221 = vsyncadd [#allocation3], %s220
          %s222 = sshll.u32 [#allocation2], 4
          %s223 = int_to_ptr.vmem [resolvable:$true] %s222
          %228 = dma.hbm_to_vmem [thread:$0]  %s3, 24576, %s223, [#allocation3], 256, 256, 16
        $region24: #{no4_forward.1} parent=11 // pred_fallthru
          _
        // Predicated region
        $region25: #{no4_forward.1} parent=11 // pred_check
          %p229 = pneg %p127
        $region26: #{no4_forward.1} parent=11 // pred_check_branch
          %231 = sbr.rel (%p229) target = $region28
        $region27: #{no4_forward.1} parent=11 // pred_region
          _
        $region28: #{no4_forward.1} parent=11 // pred_fallthru
          _
        // Predicated region
        $region29: #{no4_forward.1} parent=11 // pred_check
          %p232 = pneg %p148
        $region30: #{no4_forward.1} parent=11 // pred_check_branch
          %234 = sbr.rel (%p232) target = $region32
        $region31: #{no4_forward.1} parent=11 // pred_region
          _
        $region32: #{no4_forward.1} parent=11 // pred_fallthru
          _
        // Predicated region
        $region33: #{no4_forward.1} parent=11 // pred_check
          %p235 = pneg %p169
        $region34: #{no4_forward.1} parent=11 // pred_check_branch
          %237 = sbr.rel (%p235) target = $region36
        $region35: #{no4_forward.1} parent=11 // pred_region
          _
        $region36: #{no4_forward.1} parent=11 // pred_fallthru
          _
      $region12: #{no4_forward.1} parent=5 // pred_fallthru
        _
      %p238 = scmp.lt.s32.totalorder %s17, 2
      // Predicated region
      $region37: #{no4_forward.1} parent=5 // pred_check
        %p239 = pneg %p238
      $region38: #{no4_forward.1} parent=5 // pred_check_branch
        %241 = sbr.rel (%p239) target = $region40
      $region39: #{no4_forward.1} parent=5 // pred_region
        // Predicated region
        $region41: #{no4_forward.1} parent=39 // pred_check
          %p242 = pneg %p37
        $region42: #{no4_forward.1} parent=39 // pred_check_branch
          %244 = sbr.rel (%p242) target = $region44
        $region43: #{no4_forward.1} parent=39 // pred_region
          %p245 = scmp.lt.s32.totalorder %s17, 1
          %s246 = scalar_select %p245, %s17, 1
          %s247 = smul.addr %s246, 8
          %s248 = scalar_lea.vmem %s0, %s247
        $region44: #{no4_forward.1} parent=39 // pred_fallthru
          _
      $region40: #{no4_forward.1} parent=5 // pred_fallthru
        _
      %p249 = scmp.le.s32.totalorder 1, %s17
      %p250 = scmp.lt.s32.totalorder %s17, 3
      %p251 = pnand %p249, %p250
      %p252 = pneg %p251
      // Predicated region
      $region45: #{no4_forward.1} parent=5 // pred_check
        _
      $region46: #{no4_forward.1} parent=5 // pred_check_branch
        %254 = sbr.rel (%p251) target = $region48
      $region47: #{no4_forward.1} parent=5 // pred_region
        %s255 = ssub.s32 %s17, 1
        // Predicated region
        $region49: #{no4_forward.1} parent=47 // pred_check
          %p256 = pneg %p106
        $region50: #{no4_forward.1} parent=47 // pred_check_branch
          %258 = sbr.rel (%p256) target = $region52
        $region51: #{no4_forward.1} parent=47 // pred_region
          %259 = dma.done [#allocation3], 24576
        $region52: #{no4_forward.1} parent=47 // pred_fallthru
          _
        %p260 = scmp.lt.s32.totalorder %s22, 1
        %s261 = scalar_select %p260, %s22, 1
        %s262 = smul.addr %s261, 8
        %s263 = scalar_lea.vmem %s0, %s262
        %p264 = pneg %p43
        %p265 = pneg %p40
        %p266 = pneg %p64
        %p267 = pneg %p61
        %p268 = pneg %p85
        %p269 = pneg %p82
        %p270 = pneg %p106
        %p271 = pneg %p103
        %p272 = pneg %p127
        %p273 = pneg %p124
        %p274 = pneg %p148
        %p275 = pneg %p145
        %p276 = pneg %p169
        %p277 = pneg %p166
        %p278 = pneg %p195
        %p279 = pneg %p192
        %s280 = sand.u32 %s182, 1
        %s281 = scalar_lea.sflag [#allocation4], %s280
        %s282 = sand.u32 %s182, 1
        %s283 = smul.addr %s282, 8
        %s284 = scalar_lea.vmem [#allocation5], %s283
        %p285 = scmp.lt.s32.totalorder %s22, 1
        %s286 = scalar_select %p285, %s22, 1
        %s287 = smul.addr %s286, 8
        %s288 = scalar_lea.vmem %s0, %s287
        %v289 = vld [vmem:[%s288] sm:$0xff]
        %v290 = vld [vmem:[%s1] sm:$0xff]
        %v291 = vld [vmem:[%s1 + $0x8] sm:$0xff]
        %v292 = vld [vmem:[%s1 + $0x10] sm:$0xff]
        %v293 = vld [vmem:[%s1 + $0x18] sm:$0xff]
        %v294 = vld [vmem:[%s1 + $0x20] sm:$0xff]
        %v295 = vld [vmem:[%s1 + $0x28] sm:$0xff]
        %v296 = vld [vmem:[%s1 + $0x30] sm:$0xff]
        %v297 = vld [vmem:[%s1 + $0x38] sm:$0xff]
        %v298 = vld [vmem:[%s1 + $0x40] sm:$0xff]
        %v299 = vld [vmem:[%s1 + $0x48] sm:$0xff]
        %v300 = vld [vmem:[%s1 + $0x50] sm:$0xff]
        %v301 = vld [vmem:[%s1 + $0x58] sm:$0xff]
        %v302 = vld [vmem:[%s1 + $0x60] sm:$0xff]
        %v303 = vld [vmem:[%s1 + $0x68] sm:$0xff]
        %v304 = vld [vmem:[%s1 + $0x70] sm:$0xff]
        %v305 = vld [vmem:[%s1 + $0x78] sm:$0xff]
        %v306 = vld [vmem:[%s1 + $0x80] sm:$0xff]
        %v307 = vld [vmem:[%s1 + $0x88] sm:$0xff]
        %v308 = vld [vmem:[%s1 + $0x90] sm:$0xff]
        %v309 = vld [vmem:[%s1 + $0x98] sm:$0xff]
        %v310 = vld [vmem:[%s1 + $0xa0] sm:$0xff]
        %v311 = vld [vmem:[%s1 + $0xa8] sm:$0xff]
        %v312 = vld [vmem:[%s1 + $0xb0] sm:$0xff]
        %v313 = vld [vmem:[%s1 + $0xb8] sm:$0xff]
        %v314 = vld [vmem:[%s1 + $0xc0] sm:$0xff]
        %v315 = vld [vmem:[%s1 + $0xc8] sm:$0xff]
        %v316 = vld [vmem:[%s1 + $0xd0] sm:$0xff]
        %v317 = vld [vmem:[%s1 + $0xd8] sm:$0xff]
        %v318 = vld [vmem:[%s1 + $0xe0] sm:$0xff]
        %v319 = vld [vmem:[%s1 + $0xe8] sm:$0xff]
        %v320 = vld [vmem:[%s2] sm:$0x3]
        %v322 = vlaneseq
        %v323 = vshrl.u32 %v322, 7
        %v324 = vsub.s32 0, %v323
        %v325 = vrot.slane %v320, %v324
        %v326 = vlaneseq
        %v327 = vshrl.u32 %v326, 7
        %v328 = vsub.s32 1, %v327
        %v329 = vrot.slane %v320, %v328
        %vm332 = vcmask 982016
        %v334 = vsel %vm332, %v289, 0
        %336 = vmatprep.subr.mxu0 %v291
        %337 = vmatpush1.msra.mxu0 %v290
        %338 = vmatprep.subr.mxu0 %v293
        %339 = vmatpush1.msra.mxu0 %v292
        %340 = vmatprep.subr.mxu0 %v295
        %341 = vmatpush1.msra.mxu0 %v294
        %342 = vmatprep.subr.mxu0 %v297
        %343 = vmatpush1.msra.mxu0 %v296
        %344 = vmatprep.subr.mxu0 %v299
        %345 = vmatpush1.msra.mxu0 %v298
        %346 = vmatprep.subr.mxu0 %v301
        %347 = vmatpush1.msra.mxu0 %v300
        %348 = vmatprep.subr.mxu0 %v303
        %349 = vmatpush1.msra.mxu0 %v302
        %350 = vmatprep.subr.mxu0 %v305
        %351 = vmatpush1.msra.mxu0 %v304
        %352 = vmatprep.subr.mxu0 %v307
        %353 = vmatpush1.msra.mxu0 %v306
        %354 = vmatprep.subr.mxu0 %v309
        %355 = vmatpush1.msra.mxu0 %v308
        %356 = vmatprep.subr.mxu0 %v311
        %357 = vmatpush1.msra.mxu0 %v310
        %358 = vmatprep.subr.mxu0 %v313
        %359 = vmatpush1.msra.mxu0 %v312
        %360 = vmatprep.subr.mxu0 %v315
        %361 = vmatpush1.msra.mxu0 %v314
        %362 = vmatprep.subr.mxu0 %v317
        %363 = vmatpush1.msra.mxu0 %v316
        %364 = vmatprep.subr.mxu0 %v319
        %365 = vmatpush1.msra.mxu0 %v318
        %366 = vmatprep.subr.mxu0 0.0
        %367 = vmatpush1.msra.mxu0 0.0
        %368 = vmatprep.subr.mxu0 0.0
        %369 = vmatpush1.msra.mxu0 0.0
        %370 = vmatprep.subr.mxu0 0.0
        %371 = vmatpush1.msra.mxu0 0.0
        %372 = vmatprep.subr.mxu0 0.0
        %373 = vmatpush1.msra.mxu0 0.0
        %374 = vmatprep.subr.mxu0 0.0
        %375 = vmatpush1.msra.mxu0 0.0
        %376 = vmatprep.subr.mxu0 0.0
        %377 = vmatpush1.msra.mxu0 0.0
        %378 = vmatprep.subr.mxu0 0.0
        %379 = vmatpush1.msra.mxu0 0.0
        %380 = vmatprep.subr.mxu0 0.0
        %381 = vmatpush1.msra.mxu0 0.0
        %382 = vmatprep.subr.mxu0 0.0
        %383 = vmatpush1.msra.mxu0 0.0
        %384 = vmatprep.subr.mxu0 0.0
        %385 = vmatpush1.msra.mxu0 0.0
        %386 = vmatprep.subr.mxu0 0.0
        %387 = vmatpush1.msra.mxu0 0.0
        %388 = vmatprep.subr.mxu0 0.0
        %389 = vmatpush1.msra.mxu0 0.0
        %390 = vmatprep.subr.mxu0 0.0
        %391 = vmatpush1.msra.mxu0 0.0
        %392 = vmatprep.subr.mxu0 0.0
        %393 = vmatpush1.msra.mxu0 0.0
        %394 = vmatprep.subr.mxu0 0.0
        %395 = vmatpush1.msra.mxu0 0.0
        %396 = vmatprep.subr.mxu0 0.0
        %397 = vmatpush1.msra.mxu0 0.0
        %398 = vmatprep.subr.mxu0 0.0
        %399 = vmatpush1.msra.mxu0 0.0
        %400 = vmatprep.mubr.f32.mxu0 0.0
        %401 = vmatmul.mubr.f32.gmra.mrb[0].mxu0 %v334
        %v402 = vpop.f32.mrb[0].mxu0
        %v403 = vadd.f32 %v325, %v402
        %v404 = vpop.f32.mrb[0].mxu0
        %v405 = vadd.f32 %v329, %v404
        %406 = vdwg.mxu0
        %v407 = vtanh.pop %v403
        %v408 = vtanh.pop %v405
        %v409 = vld [vmem:[#allocation2] sm:$0xff]
        %v410 = vld [vmem:[#allocation2 + $0x8] sm:$0xff]
        %v411 = vld [vmem:[#allocation2 + $0x10] sm:$0xff]
        %v412 = vld [vmem:[#allocation2 + $0x18] sm:$0xff]
        %v413 = vld [vmem:[#allocation2 + $0x20] sm:$0xff]
        %v414 = vld [vmem:[#allocation2 + $0x28] sm:$0xff]
        %v415 = vld [vmem:[#allocation2 + $0x30] sm:$0xff]
        %v416 = vld [vmem:[#allocation2 + $0x38] sm:$0xff]
        %v417 = vld [vmem:[#allocation2 + $0x40] sm:$0xff]
        %v418 = vld [vmem:[#allocation2 + $0x48] sm:$0xff]
        %v419 = vld [vmem:[#allocation2 + $0x50] sm:$0xff]
        %v420 = vld [vmem:[#allocation2 + $0x58] sm:$0xff]
        %v421 = vld [vmem:[#allocation2 + $0x60] sm:$0xff]
        %v422 = vld [vmem:[#allocation2 + $0x68] sm:$0xff]
        %v423 = vld [vmem:[#allocation2 + $0x70] sm:$0xff]
        %v424 = vld [vmem:[#allocation2 + $0x78] sm:$0xff]
        %v425 = vld [vmem:[#allocation2 + $0x80] sm:$0xff]
        %v426 = vld [vmem:[#allocation2 + $0x88] sm:$0xff]
        %v427 = vld [vmem:[#allocation2 + $0x90] sm:$0xff]
        %v428 = vld [vmem:[#allocation2 + $0x98] sm:$0xff]
        %v429 = vld [vmem:[#allocation2 + $0xa0] sm:$0xff]
        %v430 = vld [vmem:[#allocation2 + $0xa8] sm:$0xff]
        %v431 = vld [vmem:[#allocation2 + $0xb0] sm:$0xff]
        %v432 = vld [vmem:[#allocation2 + $0xb8] sm:$0xff]
        %v433 = vld [vmem:[#allocation2 + $0xc0] sm:$0xff]
        %v434 = vld [vmem:[#allocation2 + $0xc8] sm:$0xff]
        %v435 = vld [vmem:[#allocation2 + $0xd0] sm:$0xff]
        %v436 = vld [vmem:[#allocation2 + $0xd8] sm:$0xff]
        %v437 = vld [vmem:[#allocation2 + $0xe0] sm:$0xff]
        %v438 = vld [vmem:[#allocation2 + $0xe8] sm:$0xff]
        %v439 = vld [vmem:[#allocation2 + $0xf0] sm:$0xff]
        %v440 = vld [vmem:[#allocation2 + $0xf8] sm:$0xff]
        %v441 = vld [vmem:[#allocation2 + $0x100] sm:$0xff]
        %v442 = vld [vmem:[#allocation2 + $0x108] sm:$0xff]
        %v443 = vld [vmem:[#allocation2 + $0x110] sm:$0xff]
        %v444 = vld [vmem:[#allocation2 + $0x118] sm:$0xff]
        %v445 = vld [vmem:[#allocation2 + $0x120] sm:$0xff]
        %v446 = vld [vmem:[#allocation2 + $0x128] sm:$0xff]
        %v447 = vld [vmem:[#allocation2 + $0x130] sm:$0xff]
        %v448 = vld [vmem:[#allocation2 + $0x138] sm:$0xff]
        %v449 = vld [vmem:[#allocation2 + $0x140] sm:$0xff]
        %v450 = vld [vmem:[#allocation2 + $0x148] sm:$0xff]
        %v451 = vld [vmem:[#allocation2 + $0x150] sm:$0xff]
        %v452 = vld [vmem:[#allocation2 + $0x158] sm:$0xff]
        %v453 = vld [vmem:[#allocation2 + $0x160] sm:$0xff]
        %v454 = vld [vmem:[#allocation2 + $0x168] sm:$0xff]
        %v455 = vld [vmem:[#allocation2 + $0x170] sm:$0xff]
        %v456 = vld [vmem:[#allocation2 + $0x178] sm:$0xff]
        %v457 = vld [vmem:[#allocation2 + $0x180] sm:$0xff]
        %v458 = vld [vmem:[#allocation2 + $0x188] sm:$0xff]
        %v459 = vld [vmem:[#allocation2 + $0x190] sm:$0xff]
        %v460 = vld [vmem:[#allocation2 + $0x198] sm:$0xff]
        %v461 = vld [vmem:[#allocation2 + $0x1a0] sm:$0xff]
        %v462 = vld [vmem:[#allocation2 + $0x1a8] sm:$0xff]
        %v463 = vld [vmem:[#allocation2 + $0x1b0] sm:$0xff]
        %v464 = vld [vmem:[#allocation2 + $0x1b8] sm:$0xff]
        %v465 = vld [vmem:[#allocation2 + $0x1c0] sm:$0xff]
        %v466 = vld [vmem:[#allocation2 + $0x1c8] sm:$0xff]
        %v467 = vld [vmem:[#allocation2 + $0x1d0] sm:$0xff]
        %v468 = vld [vmem:[#allocation2 + $0x1d8] sm:$0xff]
        %v469 = vld [vmem:[#allocation2 + $0x1e0] sm:$0xff]
        %v470 = vld [vmem:[#allocation2 + $0x1e8] sm:$0xff]
        %v471 = vld [vmem:[#allocation2 + $0x1f0] sm:$0xff]
        %v472 = vld [vmem:[#allocation2 + $0x1f8] sm:$0xff]
        %v473 = vld [vmem:[%s4] sm:$0x3]
        %v475 = vlaneseq
        %v476 = vshrl.u32 %v475, 7
        %v477 = vsub.s32 0, %v476
        %v478 = vrot.slane %v473, %v477
        %v479 = vlaneseq
        %v480 = vshrl.u32 %v479, 7
        %v481 = vsub.s32 1, %v480
        %v482 = vrot.slane %v473, %v481
        %485 = vmatprep.subr.mxu0 %v410
        %486 = vmatpush1.msra.mxu0 %v409
        %487 = vmatprep.subr.mxu0 %v412
        %488 = vmatpush1.msra.mxu0 %v411
        %489 = vmatprep.subr.mxu0 %v414
        %490 = vmatpush1.msra.mxu0 %v413
        %491 = vmatprep.subr.mxu0 %v416
        %492 = vmatpush1.msra.mxu0 %v415
        %493 = vmatprep.subr.mxu0 %v418
        %494 = vmatpush1.msra.mxu0 %v417
        %495 = vmatprep.subr.mxu0 %v420
        %496 = vmatpush1.msra.mxu0 %v419
        %497 = vmatprep.subr.mxu0 %v422
        %498 = vmatpush1.msra.mxu0 %v421
        %499 = vmatprep.subr.mxu0 %v424
        %500 = vmatpush1.msra.mxu0 %v423
        %501 = vmatprep.subr.mxu0 %v426
        %502 = vmatpush1.msra.mxu0 %v425
        %503 = vmatprep.subr.mxu0 %v428
        %504 = vmatpush1.msra.mxu0 %v427
        %505 = vmatprep.subr.mxu0 %v430
        %506 = vmatpush1.msra.mxu0 %v429
        %507 = vmatprep.subr.mxu0 %v432
        %508 = vmatpush1.msra.mxu0 %v431
        %509 = vmatprep.subr.mxu0 %v434
        %510 = vmatpush1.msra.mxu0 %v433
        %511 = vmatprep.subr.mxu0 %v436
        %512 = vmatpush1.msra.mxu0 %v435
        %513 = vmatprep.subr.mxu0 %v438
        %514 = vmatpush1.msra.mxu0 %v437
        %515 = vmatprep.subr.mxu0 %v440
        %516 = vmatpush1.msra.mxu0 %v439
        %517 = vmatprep.subr.mxu0 %v442
        %518 = vmatpush1.msra.mxu0 %v441
        %519 = vmatprep.subr.mxu0 %v444
        %520 = vmatpush1.msra.mxu0 %v443
        %521 = vmatprep.subr.mxu0 %v446
        %522 = vmatpush1.msra.mxu0 %v445
        %523 = vmatprep.subr.mxu0 %v448
        %524 = vmatpush1.msra.mxu0 %v447
        %525 = vmatprep.subr.mxu0 %v450
        %526 = vmatpush1.msra.mxu0 %v449
        %527 = vmatprep.subr.mxu0 %v452
        %528 = vmatpush1.msra.mxu0 %v451
        %529 = vmatprep.subr.mxu0 %v454
        %530 = vmatpush1.msra.mxu0 %v453
        %531 = vmatprep.subr.mxu0 %v456
        %532 = vmatpush1.msra.mxu0 %v455
        %533 = vmatprep.subr.mxu0 %v458
        %534 = vmatpush1.msra.mxu0 %v457
        %535 = vmatprep.subr.mxu0 %v460
        %536 = vmatpush1.msra.mxu0 %v459
        %537 = vmatprep.subr.mxu0 %v462
        %538 = vmatpush1.msra.mxu0 %v461
        %539 = vmatprep.subr.mxu0 %v464
        %540 = vmatpush1.msra.mxu0 %v463
        %541 = vmatprep.subr.mxu0 %v466
        %542 = vmatpush1.msra.mxu0 %v465
        %543 = vmatprep.subr.mxu0 %v468
        %544 = vmatpush1.msra.mxu0 %v467
        %545 = vmatprep.subr.mxu0 %v470
        %546 = vmatpush1.msra.mxu0 %v469
        %547 = vmatprep.subr.mxu0 %v472
        %548 = vmatpush1.msra.mxu0 %v471
        %549 = vmatprep.mubr.f32.mxu0 %v408
        %550 = vmatmul.mubr.f32.gmra.mrb[0].mxu0 %v407
        %v551 = vpop.f32.mrb[0].mxu0
        %v552 = vadd.f32 %v478, %v551
        %v553 = vpop.f32.mrb[0].mxu0
        %v554 = vadd.f32 %v482, %v553
        %555 = vdwg.mxu0
        %v556 = vtanh.pop %v552
        %v557 = vtanh.pop %v554
        %s558 = scalar_lea.vmem [#allocation2], 512
        %v559 = vld [vmem:[%s558] sm:$0xff]
        %v560 = vld [vmem:[%s558 + $0x8] sm:$0xff]
        %v561 = vld [vmem:[%s558 + $0x10] sm:$0xff]
        %v562 = vld [vmem:[%s558 + $0x18] sm:$0xff]
        %v563 = vld [vmem:[%s558 + $0x20] sm:$0xff]
        %v564 = vld [vmem:[%s558 + $0x28] sm:$0xff]
        %v565 = vld [vmem:[%s558 + $0x30] sm:$0xff]
        %v566 = vld [vmem:[%s558 + $0x38] sm:$0xff]
        %v567 = vld [vmem:[%s558 + $0x40] sm:$0xff]
        %v568 = vld [vmem:[%s558 + $0x48] sm:$0xff]
        %v569 = vld [vmem:[%s558 + $0x50] sm:$0xff]
        %v570 = vld [vmem:[%s558 + $0x58] sm:$0xff]
        %v571 = vld [vmem:[%s558 + $0x60] sm:$0xff]
        %v572 = vld [vmem:[%s558 + $0x68] sm:$0xff]
        %v573 = vld [vmem:[%s558 + $0x70] sm:$0xff]
        %v574 = vld [vmem:[%s558 + $0x78] sm:$0xff]
        %v575 = vld [vmem:[%s558 + $0x80] sm:$0xff]
        %v576 = vld [vmem:[%s558 + $0x88] sm:$0xff]
        %v577 = vld [vmem:[%s558 + $0x90] sm:$0xff]
        %v578 = vld [vmem:[%s558 + $0x98] sm:$0xff]
        %v579 = vld [vmem:[%s558 + $0xa0] sm:$0xff]
        %v580 = vld [vmem:[%s558 + $0xa8] sm:$0xff]
        %v581 = vld [vmem:[%s558 + $0xb0] sm:$0xff]
        %v582 = vld [vmem:[%s558 + $0xb8] sm:$0xff]
        %v583 = vld [vmem:[%s558 + $0xc0] sm:$0xff]
        %v584 = vld [vmem:[%s558 + $0xc8] sm:$0xff]
        %v585 = vld [vmem:[%s558 + $0xd0] sm:$0xff]
        %v586 = vld [vmem:[%s558 + $0xd8] sm:$0xff]
        %v587 = vld [vmem:[%s558 + $0xe0] sm:$0xff]
        %v588 = vld [vmem:[%s558 + $0xe8] sm:$0xff]
        %v589 = vld [vmem:[%s558 + $0xf0] sm:$0xff]
        %v590 = vld [vmem:[%s558 + $0xf8] sm:$0xff]
        %v591 = vld [vmem:[%s558 + $0x100] sm:$0xff]
        %v592 = vld [vmem:[%s558 + $0x108] sm:$0xff]
        %v593 = vld [vmem:[%s558 + $0x110] sm:$0xff]
        %v594 = vld [vmem:[%s558 + $0x118] sm:$0xff]
        %v595 = vld [vmem:[%s558 + $0x120] sm:$0xff]
        %v596 = vld [vmem:[%s558 + $0x128] sm:$0xff]
        %v597 = vld [vmem:[%s558 + $0x130] sm:$0xff]
        %v598 = vld [vmem:[%s558 + $0x138] sm:$0xff]
        %v599 = vld [vmem:[%s558 + $0x140] sm:$0xff]
        %v600 = vld [vmem:[%s558 + $0x148] sm:$0xff]
        %v601 = vld [vmem:[%s558 + $0x150] sm:$0xff]
        %v602 = vld [vmem:[%s558 + $0x158] sm:$0xff]
        %v603 = vld [vmem:[%s558 + $0x160] sm:$0xff]
        %v604 = vld [vmem:[%s558 + $0x168] sm:$0xff]
        %v605 = vld [vmem:[%s558 + $0x170] sm:$0xff]
        %v606 = vld [vmem:[%s558 + $0x178] sm:$0xff]
        %v607 = vld [vmem:[%s558 + $0x180] sm:$0xff]
        %v608 = vld [vmem:[%s558 + $0x188] sm:$0xff]
        %v609 = vld [vmem:[%s558 + $0x190] sm:$0xff]
        %v610 = vld [vmem:[%s558 + $0x198] sm:$0xff]
        %v611 = vld [vmem:[%s558 + $0x1a0] sm:$0xff]
        %v612 = vld [vmem:[%s558 + $0x1a8] sm:$0xff]
        %v613 = vld [vmem:[%s558 + $0x1b0] sm:$0xff]
        %v614 = vld [vmem:[%s558 + $0x1b8] sm:$0xff]
        %v615 = vld [vmem:[%s558 + $0x1c0] sm:$0xff]
        %v616 = vld [vmem:[%s558 + $0x1c8] sm:$0xff]
        %v617 = vld [vmem:[%s558 + $0x1d0] sm:$0xff]
        %v618 = vld [vmem:[%s558 + $0x1d8] sm:$0xff]
        %v619 = vld [vmem:[%s558 + $0x1e0] sm:$0xff]
        %v620 = vld [vmem:[%s558 + $0x1e8] sm:$0xff]
        %v621 = vld [vmem:[%s558 + $0x1f0] sm:$0xff]
        %v622 = vld [vmem:[%s558 + $0x1f8] sm:$0xff]
        %s623 = scalar_lea.vmem %s4, 2
        %v624 = vld [vmem:[%s623] sm:$0x3]
        %v626 = vlaneseq
        %v627 = vshrl.u32 %v626, 7
        %v628 = vsub.s32 0, %v627
        %v629 = vrot.slane %v624, %v628
        %v630 = vlaneseq
        %v631 = vshrl.u32 %v630, 7
        %v632 = vsub.s32 1, %v631
        %v633 = vrot.slane %v624, %v632
        %636 = vmatprep.subr.mxu0 %v560
        %637 = vmatpush1.msra.mxu0 %v559
        %638 = vmatprep.subr.mxu0 %v562
        %639 = vmatpush1.msra.mxu0 %v561
        %640 = vmatprep.subr.mxu0 %v564
        %641 = vmatpush1.msra.mxu0 %v563
        %642 = vmatprep.subr.mxu0 %v566
        %643 = vmatpush1.msra.mxu0 %v565
        %644 = vmatprep.subr.mxu0 %v568
        %645 = vmatpush1.msra.mxu0 %v567
        %646 = vmatprep.subr.mxu0 %v570
        %647 = vmatpush1.msra.mxu0 %v569
        %648 = vmatprep.subr.mxu0 %v572
        %649 = vmatpush1.msra.mxu0 %v571
        %650 = vmatprep.subr.mxu0 %v574
        %651 = vmatpush1.msra.mxu0 %v573
        %652 = vmatprep.subr.mxu0 %v576
        %653 = vmatpush1.msra.mxu0 %v575
        %654 = vmatprep.subr.mxu0 %v578
        %655 = vmatpush1.msra.mxu0 %v577
        %656 = vmatprep.subr.mxu0 %v580
        %657 = vmatpush1.msra.mxu0 %v579
        %658 = vmatprep.subr.mxu0 %v582
        %659 = vmatpush1.msra.mxu0 %v581
        %660 = vmatprep.subr.mxu0 %v584
        %661 = vmatpush1.msra.mxu0 %v583
        %662 = vmatprep.subr.mxu0 %v586
        %663 = vmatpush1.msra.mxu0 %v585
        %664 = vmatprep.subr.mxu0 %v588
        %665 = vmatpush1.msra.mxu0 %v587
        %666 = vmatprep.subr.mxu0 %v590
        %667 = vmatpush1.msra.mxu0 %v589
        %668 = vmatprep.subr.mxu0 %v592
        %669 = vmatpush1.msra.mxu0 %v591
        %670 = vmatprep.subr.mxu0 %v594
        %671 = vmatpush1.msra.mxu0 %v593
        %672 = vmatprep.subr.mxu0 %v596
        %673 = vmatpush1.msra.mxu0 %v595
        %674 = vmatprep.subr.mxu0 %v598
        %675 = vmatpush1.msra.mxu0 %v597
        %676 = vmatprep.subr.mxu0 %v600
        %677 = vmatpush1.msra.mxu0 %v599
        %678 = vmatprep.subr.mxu0 %v602
        %679 = vmatpush1.msra.mxu0 %v601
        %680 = vmatprep.subr.mxu0 %v604
        %681 = vmatpush1.msra.mxu0 %v603
        %682 = vmatprep.subr.mxu0 %v606
        %683 = vmatpush1.msra.mxu0 %v605
        %684 = vmatprep.subr.mxu0 %v608
        %685 = vmatpush1.msra.mxu0 %v607
        %686 = vmatprep.subr.mxu0 %v610
        %687 = vmatpush1.msra.mxu0 %v609
        %688 = vmatprep.subr.mxu0 %v612
        %689 = vmatpush1.msra.mxu0 %v611
        %690 = vmatprep.subr.mxu0 %v614
        %691 = vmatpush1.msra.mxu0 %v613
        %692 = vmatprep.subr.mxu0 %v616
        %693 = vmatpush1.msra.mxu0 %v615
        %694 = vmatprep.subr.mxu0 %v618
        %695 = vmatpush1.msra.mxu0 %v617
        %696 = vmatprep.subr.mxu0 %v620
        %697 = vmatpush1.msra.mxu0 %v619
        %698 = vmatprep.subr.mxu0 %v622
        %699 = vmatpush1.msra.mxu0 %v621
        %700 = vmatprep.mubr.f32.mxu0 %v557
        %701 = vmatmul.mubr.f32.gmra.mrb[0].mxu0 %v556
        %v702 = vpop.f32.mrb[0].mxu0
        %v703 = vadd.f32 %v629, %v702
        %v704 = vpop.f32.mrb[0].mxu0
        %v705 = vadd.f32 %v633, %v704
        %706 = vdwg.mxu0
        %v707 = vtanh.pop %v703
        %v708 = vtanh.pop %v705
        %s709 = scalar_lea.vmem [#allocation2], 1024
        %v710 = vld [vmem:[%s709] sm:$0xff]
        %v711 = vld [vmem:[%s709 + $0x8] sm:$0xff]
        %v712 = vld [vmem:[%s709 + $0x10] sm:$0xff]
        %v713 = vld [vmem:[%s709 + $0x18] sm:$0xff]
        %v714 = vld [vmem:[%s709 + $0x20] sm:$0xff]
        %v715 = vld [vmem:[%s709 + $0x28] sm:$0xff]
        %v716 = vld [vmem:[%s709 + $0x30] sm:$0xff]
        %v717 = vld [vmem:[%s709 + $0x38] sm:$0xff]
        %v718 = vld [vmem:[%s709 + $0x40] sm:$0xff]
        %v719 = vld [vmem:[%s709 + $0x48] sm:$0xff]
        %v720 = vld [vmem:[%s709 + $0x50] sm:$0xff]
        %v721 = vld [vmem:[%s709 + $0x58] sm:$0xff]
        %v722 = vld [vmem:[%s709 + $0x60] sm:$0xff]
        %v723 = vld [vmem:[%s709 + $0x68] sm:$0xff]
        %v724 = vld [vmem:[%s709 + $0x70] sm:$0xff]
        %v725 = vld [vmem:[%s709 + $0x78] sm:$0xff]
        %v726 = vld [vmem:[%s709 + $0x80] sm:$0xff]
        %v727 = vld [vmem:[%s709 + $0x88] sm:$0xff]
        %v728 = vld [vmem:[%s709 + $0x90] sm:$0xff]
        %v729 = vld [vmem:[%s709 + $0x98] sm:$0xff]
        %v730 = vld [vmem:[%s709 + $0xa0] sm:$0xff]
        %v731 = vld [vmem:[%s709 + $0xa8] sm:$0xff]
        %v732 = vld [vmem:[%s709 + $0xb0] sm:$0xff]
        %v733 = vld [vmem:[%s709 + $0xb8] sm:$0xff]
        %v734 = vld [vmem:[%s709 + $0xc0] sm:$0xff]
        %v735 = vld [vmem:[%s709 + $0xc8] sm:$0xff]
        %v736 = vld [vmem:[%s709 + $0xd0] sm:$0xff]
        %v737 = vld [vmem:[%s709 + $0xd8] sm:$0xff]
        %v738 = vld [vmem:[%s709 + $0xe0] sm:$0xff]
        %v739 = vld [vmem:[%s709 + $0xe8] sm:$0xff]
        %v740 = vld [vmem:[%s709 + $0xf0] sm:$0xff]
        %v741 = vld [vmem:[%s709 + $0xf8] sm:$0xff]
        %v742 = vld [vmem:[%s709 + $0x100] sm:$0xff]
        %v743 = vld [vmem:[%s709 + $0x108] sm:$0xff]
        %v744 = vld [vmem:[%s709 + $0x110] sm:$0xff]
        %v745 = vld [vmem:[%s709 + $0x118] sm:$0xff]
        %v746 = vld [vmem:[%s709 + $0x120] sm:$0xff]
        %v747 = vld [vmem:[%s709 + $0x128] sm:$0xff]
        %v748 = vld [vmem:[%s709 + $0x130] sm:$0xff]
        %v749 = vld [vmem:[%s709 + $0x138] sm:$0xff]
        %v750 = vld [vmem:[%s709 + $0x140] sm:$0xff]
        %v751 = vld [vmem:[%s709 + $0x148] sm:$0xff]
        %v752 = vld [vmem:[%s709 + $0x150] sm:$0xff]
        %v753 = vld [vmem:[%s709 + $0x158] sm:$0xff]
        %v754 = vld [vmem:[%s709 + $0x160] sm:$0xff]
        %v755 = vld [vmem:[%s709 + $0x168] sm:$0xff]
        %v756 = vld [vmem:[%s709 + $0x170] sm:$0xff]
        %v757 = vld [vmem:[%s709 + $0x178] sm:$0xff]
        %v758 = vld [vmem:[%s709 + $0x180] sm:$0xff]
        %v759 = vld [vmem:[%s709 + $0x188] sm:$0xff]
        %v760 = vld [vmem:[%s709 + $0x190] sm:$0xff]
        %v761 = vld [vmem:[%s709 + $0x198] sm:$0xff]
        %v762 = vld [vmem:[%s709 + $0x1a0] sm:$0xff]
        %v763 = vld [vmem:[%s709 + $0x1a8] sm:$0xff]
        %v764 = vld [vmem:[%s709 + $0x1b0] sm:$0xff]
        %v765 = vld [vmem:[%s709 + $0x1b8] sm:$0xff]
        %v766 = vld [vmem:[%s709 + $0x1c0] sm:$0xff]
        %v767 = vld [vmem:[%s709 + $0x1c8] sm:$0xff]
        %v768 = vld [vmem:[%s709 + $0x1d0] sm:$0xff]
        %v769 = vld [vmem:[%s709 + $0x1d8] sm:$0xff]
        %v770 = vld [vmem:[%s709 + $0x1e0] sm:$0xff]
        %v771 = vld [vmem:[%s709 + $0x1e8] sm:$0xff]
        %v772 = vld [vmem:[%s709 + $0x1f0] sm:$0xff]
        %v773 = vld [vmem:[%s709 + $0x1f8] sm:$0xff]
        %s774 = scalar_lea.vmem %s4, 4
        %v775 = vld [vmem:[%s774] sm:$0x3]
        %v777 = vlaneseq
        %v778 = vshrl.u32 %v777, 7
        %v779 = vsub.s32 0, %v778
        %v780 = vrot.slane %v775, %v779
        %v781 = vlaneseq
        %v782 = vshrl.u32 %v781, 7
        %v783 = vsub.s32 1, %v782
        %v784 = vrot.slane %v775, %v783
        %787 = vmatprep.subr.mxu0 %v711
        %788 = vmatpush1.msra.mxu0 %v710
        %789 = vmatprep.subr.mxu0 %v713
        %790 = vmatpush1.msra.mxu0 %v712
        %791 = vmatprep.subr.mxu0 %v715
        %792 = vmatpush1.msra.mxu0 %v714
        %793 = vmatprep.subr.mxu0 %v717
        %794 = vmatpush1.msra.mxu0 %v716
        %795 = vmatprep.subr.mxu0 %v719
        %796 = vmatpush1.msra.mxu0 %v718
        %797 = vmatprep.subr.mxu0 %v721
        %798 = vmatpush1.msra.mxu0 %v720
        %799 = vmatprep.subr.mxu0 %v723
        %800 = vmatpush1.msra.mxu0 %v722
        %801 = vmatprep.subr.mxu0 %v725
        %802 = vmatpush1.msra.mxu0 %v724
        %803 = vmatprep.subr.mxu0 %v727
        %804 = vmatpush1.msra.mxu0 %v726
        %805 = vmatprep.subr.mxu0 %v729
        %806 = vmatpush1.msra.mxu0 %v728
        %807 = vmatprep.subr.mxu0 %v731
        %808 = vmatpush1.msra.mxu0 %v730
        %809 = vmatprep.subr.mxu0 %v733
        %810 = vmatpush1.msra.mxu0 %v732
        %811 = vmatprep.subr.mxu0 %v735
        %812 = vmatpush1.msra.mxu0 %v734
        %813 = vmatprep.subr.mxu0 %v737
        %814 = vmatpush1.msra.mxu0 %v736
        %815 = vmatprep.subr.mxu0 %v739
        %816 = vmatpush1.msra.mxu0 %v738
        %817 = vmatprep.subr.mxu0 %v741
        %818 = vmatpush1.msra.mxu0 %v740
        %819 = vmatprep.subr.mxu0 %v743
        %820 = vmatpush1.msra.mxu0 %v742
        %821 = vmatprep.subr.mxu0 %v745
        %822 = vmatpush1.msra.mxu0 %v744
        %823 = vmatprep.subr.mxu0 %v747
        %824 = vmatpush1.msra.mxu0 %v746
        %825 = vmatprep.subr.mxu0 %v749
        %826 = vmatpush1.msra.mxu0 %v748
        %827 = vmatprep.subr.mxu0 %v751
        %828 = vmatpush1.msra.mxu0 %v750
        %829 = vmatprep.subr.mxu0 %v753
        %830 = vmatpush1.msra.mxu0 %v752
        %831 = vmatprep.subr.mxu0 %v755
        %832 = vmatpush1.msra.mxu0 %v754
        %833 = vmatprep.subr.mxu0 %v757
        %834 = vmatpush1.msra.mxu0 %v756
        %835 = vmatprep.subr.mxu0 %v759
        %836 = vmatpush1.msra.mxu0 %v758
        %837 = vmatprep.subr.mxu0 %v761
        %838 = vmatpush1.msra.mxu0 %v760
        %839 = vmatprep.subr.mxu0 %v763
        %840 = vmatpush1.msra.mxu0 %v762
        %841 = vmatprep.subr.mxu0 %v765
        %842 = vmatpush1.msra.mxu0 %v764
        %843 = vmatprep.subr.mxu0 %v767
        %844 = vmatpush1.msra.mxu0 %v766
        %845 = vmatprep.subr.mxu0 %v769
        %846 = vmatpush1.msra.mxu0 %v768
        %847 = vmatprep.subr.mxu0 %v771
        %848 = vmatpush1.msra.mxu0 %v770
        %849 = vmatprep.subr.mxu0 %v773
        %850 = vmatpush1.msra.mxu0 %v772
        %851 = vmatprep.mubr.f32.mxu0 %v708
        %852 = vmatmul.mubr.f32.gmra.mrb[0].mxu0 %v707
        %v853 = vpop.f32.mrb[0].mxu0
        %v854 = vadd.f32 %v780, %v853
        %v855 = vpop.f32.mrb[0].mxu0
        %v856 = vadd.f32 %v784, %v855
        %857 = vdwg.mxu0
        %v858 = vtanh.pop %v854
        %v859 = vtanh.pop %v856
        %v860 = vld [vmem:[%s5] sm:$0xff]
        %v861 = vld [vmem:[%s5 + $0x8] sm:$0xff]
        %v862 = vld [vmem:[%s5 + $0x10] sm:$0xff]
        %v863 = vld [vmem:[%s5 + $0x18] sm:$0xff]
        %v864 = vld [vmem:[%s5 + $0x20] sm:$0xff]
        %v865 = vld [vmem:[%s5 + $0x28] sm:$0xff]
        %v866 = vld [vmem:[%s5 + $0x30] sm:$0xff]
        %v867 = vld [vmem:[%s5 + $0x38] sm:$0xff]
        %v868 = vld [vmem:[%s5 + $0x40] sm:$0xff]
        %v869 = vld [vmem:[%s5 + $0x48] sm:$0xff]
        %v870 = vld [vmem:[%s5 + $0x50] sm:$0xff]
        %v871 = vld [vmem:[%s5 + $0x58] sm:$0xff]
        %v872 = vld [vmem:[%s5 + $0x60] sm:$0xff]
        %v873 = vld [vmem:[%s5 + $0x68] sm:$0xff]
        %v874 = vld [vmem:[%s5 + $0x70] sm:$0xff]
        %v875 = vld [vmem:[%s5 + $0x78] sm:$0xff]
        %v876 = vld [vmem:[%s5 + $0x80] sm:$0xff]
        %v877 = vld [vmem:[%s5 + $0x88] sm:$0xff]
        %v878 = vld [vmem:[%s5 + $0x90] sm:$0xff]
        %v879 = vld [vmem:[%s5 + $0x98] sm:$0xff]
        %v880 = vld [vmem:[%s5 + $0xa0] sm:$0xff]
        %v881 = vld [vmem:[%s5 + $0xa8] sm:$0xff]
        %v882 = vld [vmem:[%s5 + $0xb0] sm:$0xff]
        %v883 = vld [vmem:[%s5 + $0xb8] sm:$0xff]
        %v884 = vld [vmem:[%s5 + $0xc0] sm:$0xff]
        %v885 = vld [vmem:[%s5 + $0xc8] sm:$0xff]
        %v886 = vld [vmem:[%s5 + $0xd0] sm:$0xff]
        %v887 = vld [vmem:[%s5 + $0xd8] sm:$0xff]
        %v888 = vld [vmem:[%s5 + $0xe0] sm:$0xff]
        %v889 = vld [vmem:[%s5 + $0xe8] sm:$0xff]
        %v890 = vld [vmem:[%s5 + $0xf0] sm:$0xff]
        %v891 = vld [vmem:[%s5 + $0xf8] sm:$0xff]
        %v892 = vld [vmem:[%s6] sm:$0x1]
        %v894 = vlaneseq
        %v895 = vshrl.u32 %v894, 7
        %v896 = vsub.s32 0, %v895
        %v897 = vrot.slane %v892, %v896
        %899 = vmatprep.subr.mxu0 0.0
        %900 = vmatpush1.msra.mxu0 %v860
        %901 = vmatprep.subr.mxu0 0.0
        %902 = vmatpush1.msra.mxu0 %v861
        %903 = vmatprep.subr.mxu0 0.0
        %904 = vmatpush1.msra.mxu0 %v862
        %905 = vmatprep.subr.mxu0 0.0
        %906 = vmatpush1.msra.mxu0 %v863
        %907 = vmatprep.subr.mxu0 0.0
        %908 = vmatpush1.msra.mxu0 %v864
        %909 = vmatprep.subr.mxu0 0.0
        %910 = vmatpush1.msra.mxu0 %v865
        %911 = vmatprep.subr.mxu0 0.0
        %912 = vmatpush1.msra.mxu0 %v866
        %913 = vmatprep.subr.mxu0 0.0
        %914 = vmatpush1.msra.mxu0 %v867
        %915 = vmatprep.subr.mxu0 0.0
        %916 = vmatpush1.msra.mxu0 %v868
        %917 = vmatprep.subr.mxu0 0.0
        %918 = vmatpush1.msra.mxu0 %v869
        %919 = vmatprep.subr.mxu0 0.0
        %920 = vmatpush1.msra.mxu0 %v870
        %921 = vmatprep.subr.mxu0 0.0
        %922 = vmatpush1.msra.mxu0 %v871
        %923 = vmatprep.subr.mxu0 0.0
        %924 = vmatpush1.msra.mxu0 %v872
        %925 = vmatprep.subr.mxu0 0.0
        %926 = vmatpush1.msra.mxu0 %v873
        %927 = vmatprep.subr.mxu0 0.0
        %928 = vmatpush1.msra.mxu0 %v874
        %929 = vmatprep.subr.mxu0 0.0
        %930 = vmatpush1.msra.mxu0 %v875
        %931 = vmatprep.subr.mxu0 0.0
        %932 = vmatpush1.msra.mxu0 %v876
        %933 = vmatprep.subr.mxu0 0.0
        %934 = vmatpush1.msra.mxu0 %v877
        %935 = vmatprep.subr.mxu0 0.0
        %936 = vmatpush1.msra.mxu0 %v878
        %937 = vmatprep.subr.mxu0 0.0
        %938 = vmatpush1.msra.mxu0 %v879
        %939 = vmatprep.subr.mxu0 0.0
        %940 = vmatpush1.msra.mxu0 %v880
        %941 = vmatprep.subr.mxu0 0.0
        %942 = vmatpush1.msra.mxu0 %v881
        %943 = vmatprep.subr.mxu0 0.0
        %944 = vmatpush1.msra.mxu0 %v882
        %945 = vmatprep.subr.mxu0 0.0
        %946 = vmatpush1.msra.mxu0 %v883
        %947 = vmatprep.subr.mxu0 0.0
        %948 = vmatpush1.msra.mxu0 %v884
        %949 = vmatprep.subr.mxu0 0.0
        %950 = vmatpush1.msra.mxu0 %v885
        %951 = vmatprep.subr.mxu0 0.0
        %952 = vmatpush1.msra.mxu0 %v886
        %953 = vmatprep.subr.mxu0 0.0
        %954 = vmatpush1.msra.mxu0 %v887
        %955 = vmatprep.subr.mxu0 0.0
        %956 = vmatpush1.msra.mxu0 %v888
        %957 = vmatprep.subr.mxu0 0.0
        %958 = vmatpush1.msra.mxu0 %v889
        %959 = vmatprep.subr.mxu0 0.0
        %960 = vmatpush1.msra.mxu0 %v890
        %961 = vmatprep.subr.mxu0 0.0
        %962 = vmatpush1.msra.mxu0 %v891
        %963 = vmatprep.mubr.f32.mxu0 %v859
        %964 = vmatmul.mubr.f32.gmra.mrb[0].mxu0 %v858
        %v965 = vpop.f32.mrb[0].mxu0
        %v966 = vadd.f32 %v897, %v965
        %v967 = vpop.f32.mrb[0].mxu0
        %968 = vdwg.mxu0
        %v969 = vadd.f32 %v289, %v966
        %970 = vst.msk [vmem:[%s284] sm:$0xff] %vm332, %v969
        %s971 = sand.u32 %s182, 1
        %s972 = scalar_lea.sflag [#allocation4], %s971
        %s973 = sand.u32 %s182, 1
        %s974 = smul.addr %s973, 8
        %s975 = scalar_lea.vmem [#allocation5], %s974
        // Predicated region
        $region53: #{no4_forward.1} parent=47 // pred_check
          %p976 = pneg %p192
        $region54: #{no4_forward.1} parent=47 // pred_check_branch
          %978 = sbr.rel (%p976) target = $region56
        $region55: #{no4_forward.1} parent=47 // pred_region
          %s980 = ssub.s32 128, 128
          %981 = vsyncadd %s972, %s980
          %s982 = smul.addr %s22, 128
          %s983 = scalar_lea.hbm %s7, %s982
          %s985 = sshll.u32 %s975, 4
          %s986 = int_to_ptr.vmem [resolvable:$true] %s985
          %988 = dma.vmem_to_hbm [thread:$0]  %s986, 128, %s983, %s972
        $region56: #{no4_forward.1} parent=47 // pred_fallthru
          _
      $region48: #{no4_forward.1} parent=5 // pred_fallthru
        _
      %p989 = scmp.le.s32.totalorder 2, %s17
      // Predicated region
      $region57: #{no4_forward.1} parent=5 // pred_check
        %p990 = pneg %p989
      $region58: #{no4_forward.1} parent=5 // pred_check_branch
        %992 = sbr.rel (%p990) target = $region60
      $region59: #{no4_forward.1} parent=5 // pred_region
        %s993 = ssub.s32 %s17, 2
        // Predicated region
        $region61: #{no4_forward.1} parent=59 // pred_check
          %p994 = pneg %p198
        $region62: #{no4_forward.1} parent=59 // pred_check_branch
          %996 = sbr.rel (%p994) target = $region64
        $region63: #{no4_forward.1} parent=59 // pred_region
          %s997 = sand.u32 %s183, 1
          %s998 = scalar_lea.sflag [#allocation4], %s997
          %s999 = sand.u32 %s183, 1
          %s1000 = smul.addr %s999, 8
          %s1001 = scalar_lea.vmem [#allocation5], %s1000
          %1002 = dma.done %s998, 128
        $region64: #{no4_forward.1} parent=59 // pred_fallthru
          _
      $region60: #{no4_forward.1} parent=5 // pred_fallthru
        _
    $region6: #{no4_forward.1} parent=1 // loop_footer
      %s21 = sadd.s32 1, %s17
    $region7: #{no4_forward.1} parent=1 // loop_footer_branch
      %16 = sbr.rel target = $region3
    $region8: #{no4_forward.1} parent=1 // loop_exit
      _
    %1003 = vsyncpa [#allocation3], 1
    %s1004 = scalar_lea.sflag [#allocation3], 1
    %1005 = vsyncpa %s1004, 1
    %1006 = vsyncpa [#allocation4], 1
    %s1007 = scalar_lea.sflag [#allocation4], 1
    %1008 = vsyncpa %s1007, 1

</llo_original>
